<compile_context>
chip_gen: v5e
topology: v5e:2x2
jax: 0.10.0
libtpu: 0.0.40
codegen_flags: <defaults>
</compile_context>

<pallas_src>
import math

import jax
import jax.numpy as jnp
from jax.experimental import pallas as pl
from jax.experimental.pallas import tpu as pltpu


# ---------------------------------------------------------------------------
# Pallas kernel: one lane-dense affine per row tile.
#   xT_ref : (N,   TM)    input rows, transposed (rows on lanes)
#   w_ref  : (S+H, N)     collapsed stack weight, left-multiply layout
#   c_ref  : (S+H, 1)     collapsed stack bias (broadcast along lanes)
#   out_ref: (S+H, TM)    concat([x_residual, stack_y_hat]) transposed
# ---------------------------------------------------------------------------
def _nbeats_stack_kernel(xT_ref, w_ref, c_ref, out_ref):
    out_ref[...] = (
        jnp.dot(w_ref[...], xT_ref[...], preferred_element_type=jnp.float32)
        + c_ref[...]
    )


# ---------------------------------------------------------------------------
# Trace-time algebra: fold the whole (purely affine) stack into one map.
# ---------------------------------------------------------------------------
def _collapse_stack(params):
    """Returns W_all (N, S+H), c_all (S+H,) with
       concat([x_res, stack_y_hat], -1) = x0 @ W_all + c_all."""
    w = params["w"].astype(jnp.float32)    # (NB, N, N)  torch (out, in)
    b = params["b"].astype(jnp.float32)    # (NB, N)
    wb = params["wb"].astype(jnp.float32)  # (NB, S, N)
    bb = params["bb"].astype(jnp.float32)  # (NB, S)
    wf = params["wf"].astype(jnp.float32)  # (NB, H, N)
    bf = params["bf"].astype(jnp.float32)  # (NB, H)
    NB, N, _ = w.shape
    H = wf.shape[1]

    A = jnp.eye(N, dtype=jnp.float32)      # x_n      = x0 @ A + c
    c = jnp.zeros((N,), jnp.float32)
    B = jnp.zeros((N, H), jnp.float32)     # stack_y  = x0 @ B + d
    d = jnp.zeros((H,), jnp.float32)

    for n in range(NB):
        W = w[n].T                          # (in, out) right-multiply layout
        bn = b[n]

        # theta = linear applied 5x to x_n  ->  x_n @ We + be
        # TODO(synk): the PyTorch forward calls `self.relu(x)` between linears,
        # but `self.relu` is never defined and the result is discarded -> dead
        # code / no-op; faithfully omitted.
        We = jnp.eye(N, dtype=jnp.float32)
        be = jnp.zeros((N,), jnp.float32)
        for _ in range(5):
            We = We @ W
            be = be @ W + bn

        # backcast_params and forecast_params are the same linear of the same
        # tensor -> identical theta; project once each.
        Mb = We @ wb[n].T                   # x_hat = theta @ wb^T + bb
        cb = be @ wb[n].T + bb[n]
        Mf = We @ wf[n].T                   # y_hat = theta @ wf^T + bf
        cf = be @ wf[n].T + bf[n]

        # stack_y_hat += y_hat(x_n)   (uses x_n BEFORE the residual update)
        B = B + A @ Mf
        d = d + c @ Mf + cf
        # x_{n+1} = x_n - x_hat(x_n)
        A = A - A @ Mb
        c = c - (c @ Mb + cb)

    W_all = jnp.concatenate([A, B], axis=1)     # (N, S+H)
    c_all = jnp.concatenate([c, d], axis=0)     # (S+H,)
    return W_all, c_all


# ---------------------------------------------------------------------------
# Wrapper: layout plumbing + pallas_call.
# ---------------------------------------------------------------------------
def _round_up(v, m):
    return ((v + m - 1) // m) * m


def _choose_row_tile(rows, row_tile):
    """Lane-axis row tile: multiple of 128; at least 2 grid steps when rows
    allow it so ("parallel",) shards across both v7x TensorCores."""
    if rows <= 128:
        return 128
    half = _round_up(-(-rows // 2), 128)          # ceil(rows/2) -> mult of 128
    return max(128, min(_round_up(row_tile, 128), half))


def nbeats_stack_forward(x, params, *, row_tile=1024):
    """Pallas forward of NBEATSStack.

    x: (..., seq_t_steps) float32.  `x = x - x_hat` in the reference stack
    requires seq_t_steps == num_neurons.
    params (PyTorch nn.Linear layout, stacked over blocks):
      w  (NB, N, N), b  (NB, N)   -- block.linear
      wb (NB, S, N), bb (NB, S)   -- block.linear_back
      wf (NB, H, N), bf (NB, H)   -- block.linear_forecast
    Returns (x_residual, stack_y_hat) with the PyTorch broadcasting semantics
    (stack_y_hat starts as zeros(1, 1, horizon))."""
    NB, N, _ = params["w"].shape
    S = params["wb"].shape[1]
    H = params["wf"].shape[1]
    assert x.shape[-1] == N and S == N, \
        "stack residual requires seq_t_steps == num_neurons"

    lead = x.shape[:-1]
    rows = int(math.prod(lead)) if lead else 1
    x2 = x.reshape(rows, N).astype(jnp.float32)

    # Trace-time collapse of the whole stack into one affine map.
    W_all, c_all = _collapse_stack(params)
    W_allT = W_all.T                               # (S+H, N)
    c_col = c_all[:, None]                         # (S+H, 1)

    # Transposed (rows-on-lanes) layout, padded to a multiple of the row tile.
    TM = _choose_row_tile(rows, row_tile)
    rows_p = _round_up(rows, TM)
    xT = x2.T                                      # (N, rows) -- layout plumbing
    if rows_p != rows:
        xT = jnp.pad(xT, ((0, 0), (0, rows_p - rows)))
    grid = (rows_p // TM,)
    SH = S + H

    out = pl.pallas_call(
        _nbeats_stack_kernel,
        grid=grid,
        in_specs=[
            pl.BlockSpec((N, TM), lambda i: (0, i)),       # x tile (pipelined)
            pl.BlockSpec((SH, N), lambda i: (0, 0)),       # resident weight
            pl.BlockSpec((SH, 1), lambda i: (0, 0)),       # resident bias
        ],
        out_specs=pl.BlockSpec((SH, TM), lambda i: (0, i)),  # lane-dense store
        out_shape=jax.ShapeDtypeStruct((SH, rows_p), jnp.float32),
        compiler_params=pltpu.CompilerParams(
            dimension_semantics=("parallel",),
            # Working set (double-buffered x/out tiles + KiB-scale weights) is
            # well under 1 MiB at TM=1024; 32 MiB is safe on v5e/v6e/v7x.
            vmem_limit_bytes=32 * 1024 * 1024,
        ),
    )(xT, W_allT, c_col)

    out = out[:, :rows]
    xres = out[:S].T.reshape(*lead, S)
    yacc = out[S:].T.reshape(*lead, H)
    # Reproduce `stack_y_hat = torch.zeros(1, 1, horizon) + ...` broadcasting.
    stack_y_hat = jnp.zeros((1, 1, H), jnp.float32) + yacc
    return xres, stack_y_hat


# ---------------------------------------------------------------------------
# Pure-JAX step-by-step reference mirroring the effective PyTorch forward.
# ---------------------------------------------------------------------------
def nbeats_stack_reference(x, params):
    NB = params["w"].shape[0]
    H = params["wf"].shape[1]
    stack_y = jnp.zeros((1, 1, H), jnp.float32)
    for n in range(NB):
        W, b = params["w"][n], params["b"][n]
        Wb, bb = params["wb"][n], params["bb"][n]
        Wf, bf = params["wf"][n], params["bf"][n]
        h = x
        for _ in range(4):
            h = h @ W.T + b              # self.relu(h): result discarded -> no-op
        backcast_params = h @ W.T + b
        forecast_params = h @ W.T + b
        x_hat = backcast_params @ Wb.T + bb
        y_hat = forecast_params @ Wf.T + bf
        x = x - x_hat
        stack_y = stack_y + y_hat
    return x, stack_y


# ---------------------------------------------------------------------------
if __name__ == "__main__":
    B = 2                      # batch
    N = 32                     # num_neurons == seq_t_steps (required by x - x_hat)
    S = N                      # seq_t_steps
    Hh = 8                     # horizon
    NB = 3                     # num_blocks

    key = jax.random.PRNGKey(0)
    k = jax.random.split(key, 7)
    s = 0.1
    params = {
        "w":  s * jax.random.normal(k[0], (NB, N, N), jnp.float32),
        "b":  s * jax.random.normal(k[1], (NB, N), jnp.float32),
        "wb": s * jax.random.normal(k[2], (NB, S, N), jnp.float32),
        "bb": s * jax.random.normal(k[3], (NB, S), jnp.float32),
        "wf": s * jax.random.normal(k[4], (NB, Hh, N), jnp.float32),
        "bf": s * jax.random.normal(k[5], (NB, Hh), jnp.float32),
    }
    x = jax.random.normal(k[6], (B, 1, S), jnp.float32)

    xres, yhat = jax.jit(nbeats_stack_forward)(x, params)
    jax.block_until_ready((xres, yhat))

    xres_ref, yhat_ref = nbeats_stack_reference(x, params)
    assert xres.shape == (B, 1, S), xres.shape
    assert yhat.shape == (B, 1, Hh), yhat.shape
    err = max(float(jnp.max(jnp.abs(xres - xres_ref))),
              float(jnp.max(jnp.abs(yhat - yhat_ref))))
    assert err < 1e-4, f"mismatch vs reference: {err}"
    print("KERNEL_OK")
</pallas_src>

<mosaic_0001>
module attributes {stable_mosaic.version = 11 : i64} {
  func.func @_nbeats_stack_kernel(%arg0: i32, %arg1: memref<32x128xf32, #tpu.memory_space<vmem>>, %arg2: memref<40x32xf32, #tpu.memory_space<vmem>>, %arg3: memref<40x1xf32, #tpu.memory_space<vmem>>, %arg4: memref<40x128xf32, #tpu.memory_space<vmem>>) attributes {dimension_semantics = [#tpu.dimension_semantics<parallel>], iteration_bounds = array<i64: 1>, scalar_prefetch = 0 : i64, scratch_operands = 0 : i64, tpu.core_type = #tpu.core_type<tc>, window_params = [{transform_indices = @transform_0, window_bounds = array<i64: 32, 128>}, {pipeline_mode = #tpu.pipeline_mode<synchronous>, transform_indices = @transform_1, window_bounds = array<i64: 40, 32>}, {pipeline_mode = #tpu.pipeline_mode<synchronous>, transform_indices = @transform_2, window_bounds = array<i64: 40, 1>}, {transform_indices = @transform_3, window_bounds = array<i64: 40, 128>}]} {
    %c0 = arith.constant 0 : index
    %c0_0 = arith.constant 0 : index
    %0 = vector.load %arg2[%c0, %c0_0] : memref<40x32xf32, #tpu.memory_space<vmem>>, vector<40x32xf32>
    %c0_1 = arith.constant 0 : index
    %c0_2 = arith.constant 0 : index
    %1 = vector.load %arg1[%c0_1, %c0_2] : memref<32x128xf32, #tpu.memory_space<vmem>>, vector<32x128xf32>
    %cst = arith.constant dense<0.000000e+00> : vector<40x128xf32>
    %2 = tpu.matmul %0, %1, %cst {dimension_numbers = #tpu.dot_dimension_numbers<[1], [0], [0], [1], [0, 0, 1, 1], [], []>} : vector<40x32xf32>, vector<32x128xf32>, vector<40x128xf32> -> vector<40x128xf32>
    %c0_3 = arith.constant 0 : index
    %c0_4 = arith.constant 0 : index
    %3 = vector.load %arg3[%c0_3, %c0_4] : memref<40x1xf32, #tpu.memory_space<vmem>>, vector<40x1xf32>
    %4 = vector.broadcast %3 : vector<40x1xf32> to vector<40x128xf32>
    %5 = arith.addf %2, %4 : vector<40x128xf32>
    %c0_5 = arith.constant 0 : index
    %c0_6 = arith.constant 0 : index
    %6 = vector.load %arg4[%c0_5, %c0_6] : memref<40x128xf32, #tpu.memory_space<vmem>>, vector<40x128xf32>
    tpu.vector_store %arg4[%c0_5, %c0_6], %5 {strides = array<i32>} : memref<40x128xf32, #tpu.memory_space<vmem>>, vector<40x128xf32>,
    return
  }
  func.func @transform_0(%arg0: i32) -> (i32, i32) {
    %c0_i32 = arith.constant 0 : i32
    %c0_i32_0 = arith.constant 0 : i32
    return %c0_i32, %arg0 : i32, i32
  }
  func.func @transform_1(%arg0: i32) -> (i32, i32) {
    %c0_i32 = arith.constant 0 : i32
    %c0_i32_0 = arith.constant 0 : i32
    %c0_i32_1 = arith.constant 0 : i32
    return %c0_i32, %c0_i32_0 : i32, i32
  }
  func.func @transform_2(%arg0: i32) -> (i32, i32) {
    %c0_i32 = arith.constant 0 : i32
    %c0_i32_0 = arith.constant 0 : i32
    %c0_i32_1 = arith.constant 0 : i32
    return %c0_i32, %c0_i32_0 : i32, i32
  }
  func.func @transform_3(%arg0: i32) -> (i32, i32) {
    %c0_i32 = arith.constant 0 : i32
    %c0_i32_0 = arith.constant 0 : i32
    return %c0_i32, %arg0 : i32, i32
  }
}

</mosaic_0001>

<llo_original>
// kernel: nbeats_stack_forward.1
$region0: #{nbeats_stack_forward.1}
  #allocation0 [shape = 'u32[]', space=smem, size = 0x4, offset = 0x4, fixed_abs, tag = 'smem constant byte address 0x4 - core index']
  #allocation1 [shape = 'u32[72,128]{1,0:T(1,128)}', space=vmem, size = 0x9000, scoped, tag = 'internal scratch']
  %s0 = inlined_call_operand.vmem [shape: f32[32,128], index: 0, kind: input, shape index: {}]
  %s1 = inlined_call_operand.vmem [shape: f32[40,32], index: 1, kind: input, shape index: {}]
  %s2 = inlined_call_operand.vmem [shape: f32[40,1], index: 2, kind: input, shape index: {}]
  %s3 = inlined_call_operand.vmem [shape: f32[40,128], index: 3, kind: output, shape index: {}]
  %s4 = sld [smem:[#allocation0]]
  $region22: #{nbeats_stack_forward.1} parent=0
    _
  %s6 = ssub.s32 1, %s4
  %s7 = scalar_select 0, %s6, %s4
  // Predicated region
  $region2: #{nbeats_stack_forward.1} parent=0 // pred_check
    _
  $region3: #{nbeats_stack_forward.1} parent=0 // pred_check_branch
    %9 = sbr.rel (0) target = $region5
  $region4: #{nbeats_stack_forward.1} parent=0 // pred_region
    _
  $region5: #{nbeats_stack_forward.1} parent=0 // pred_fallthru
    _
  // Predicated region
  $region6: #{nbeats_stack_forward.1} parent=0 // pred_check
    _
  $region7: #{nbeats_stack_forward.1} parent=0 // pred_check_branch
    %11 = sbr.rel (0) target = $region9
  $region8: #{nbeats_stack_forward.1} parent=0 // pred_region
    _
  $region9: #{nbeats_stack_forward.1} parent=0 // pred_fallthru
    _
  // Predicated region
  $region10: #{nbeats_stack_forward.1} parent=0 // pred_check
    _
  $region11: #{nbeats_stack_forward.1} parent=0 // pred_check_branch
    %13 = sbr.rel (0) target = $region13
  $region12: #{nbeats_stack_forward.1} parent=0 // pred_region
    _
  $region13: #{nbeats_stack_forward.1} parent=0 // pred_fallthru
    _
  %v14 = vld [vmem:[%s1] sm:$0xff]
  %v15 = vld [vmem:[%s1 + $0x8] sm:$0xff]
  %v16 = vld [vmem:[%s1 + $0x10] sm:$0xff]
  %v17 = vld [vmem:[%s1 + $0x18] sm:$0xff]
  %v18 = vld [vmem:[%s1 + $0x20] sm:$0xff]
  %v19 = vld [vmem:[%s0] sm:$0xff]
  %v20 = vld [vmem:[%s0 + $0x8] sm:$0xff]
  %v21 = vld [vmem:[%s0 + $0x10] sm:$0xff]
  %v22 = vld [vmem:[%s0 + $0x18] sm:$0xff]
  %v23 = vld [vmem:[%s2] sm:$0xff]
  %v24 = vld [vmem:[%s2 + $0x8] sm:$0xff]
  %v25 = vld [vmem:[%s2 + $0x10] sm:$0xff]
  %v26 = vld [vmem:[%s2 + $0x18] sm:$0xff]
  %v27 = vld [vmem:[%s2 + $0x20] sm:$0xff]
  %29 = vset.pattern.permute.xlu0 0
  %30 = vperm.xlu0 %29, %v23
  %v31 = vpop.permute.xlu0 %30
  %34 = vset.pattern.permute.xlu0 0
  %35 = vperm.xlu0 %34, %v24
  %v36 = vpop.permute.xlu0 %35
  %39 = vset.pattern.permute.xlu0 0
  %40 = vperm.xlu0 %39, %v25
  %v41 = vpop.permute.xlu0 %40
  %44 = vset.pattern.permute.xlu0 0
  %45 = vperm.xlu0 %44, %v26
  %v46 = vpop.permute.xlu0 %45
  %49 = vset.pattern.permute.xlu0 0
  %50 = vperm.xlu0 %49, %v27
  %v51 = vpop.permute.xlu0 %50
  %vm53 = vcmask 261120
  %v55 = vsel %vm53, %v14, 0
  %v58 = vsel %vm53, %v15, 0
  %v61 = vsel %vm53, %v16, 0
  %v64 = vsel %vm53, %v17, 0
  %v67 = vsel %vm53, %v18, 0
  %69 = vmatpush.msra.mxu0 0.0
  %70 = vmatpush.msra.mxu0 0.0
  %71 = vmatpush.msra.mxu0 0.0
  %72 = vmatpush.msra.mxu0 0.0
  %73 = vmatpush.msra.mxu0 0.0
  %74 = vmatpush.msra.mxu0 0.0
  %75 = vmatpush.msra.mxu0 0.0
  %76 = vmatpush.msra.mxu0 0.0
  %77 = vmatpush.msra.mxu0 0.0
  %78 = vmatpush.msra.mxu0 0.0
  %79 = vmatpush.msra.mxu0 0.0
  %80 = vmatpush.msra.mxu0 0.0
  %81 = vmatpush.msra.mxu0 %v22
  %82 = vmatpush.msra.mxu0 %v21
  %83 = vmatpush.msra.mxu0 %v20
  %84 = vmatpush.msra.mxu0 %v19
  %85 = vmatmul.f32.gmra.mxu0 %v55
  %v86 = vpop.f32.mrf.mxu0
  %v87 = vadd.f32 %v31, %v86
  %88 = vmatmul.f32.gmra.mxu0 %v58
  %v89 = vpop.f32.mrf.mxu0
  %v90 = vadd.f32 %v36, %v89
  %91 = vmatmul.f32.gmra.mxu0 %v61
  %v92 = vpop.f32.mrf.mxu0
  %v93 = vadd.f32 %v41, %v92
  %94 = vmatmul.f32.gmra.mxu0 %v64
  %v95 = vpop.f32.mrf.mxu0
  %v96 = vadd.f32 %v46, %v95
  %97 = vmatmul.f32.gmra.mxu0 %v67
  %v98 = vpop.f32.mrf.mxu0
  %v99 = vadd.f32 %v51, %v98
  %100 = vdwg.mxu0
  %101 = vst [vmem:[%s3] sm:$0xff] %v87
  %102 = vst [vmem:[%s3 + $0x8] sm:$0xff] %v90
  %103 = vst [vmem:[%s3 + $0x10] sm:$0xff] %v93
  %104 = vst [vmem:[%s3 + $0x18] sm:$0xff] %v96
  %105 = vst [vmem:[%s3 + $0x20] sm:$0xff] %v99
  // Predicated region
  $region14: #{nbeats_stack_forward.1} parent=0 // pred_check
    _
  $region15: #{nbeats_stack_forward.1} parent=0 // pred_check_branch
    %107 = sbr.rel (0) target = $region17
  $region16: #{nbeats_stack_forward.1} parent=0 // pred_region
    _
  $region17: #{nbeats_stack_forward.1} parent=0 // pred_fallthru
    _
  // Predicated region
  $region18: #{nbeats_stack_forward.1} parent=0 // pred_check
    _
  $region19: #{nbeats_stack_forward.1} parent=0 // pred_check_branch
    %109 = sbr.rel (0) target = $region21
  $region20: #{nbeats_stack_forward.1} parent=0 // pred_region
    _
  $region21: #{nbeats_stack_forward.1} parent=0 // pred_fallthru
    _

</llo_original>
